<compile_context>
chip_gen: v7x
topology: tpu7x:2x2x1
jax: 0.10.0
libtpu: 0.0.40
codegen_flags: <defaults>
</compile_context>

<pallas_src>
import functools

import jax
import jax.numpy as jnp
from jax.experimental import pallas as pl
from jax.experimental.pallas import tpu as pltpu


HP = 128    # padded hidden width (lane-dense)
OP = 128    # padded output width (lane-dense; real logits are [:, :3])


def _round_up(x, m):
    return (x + m - 1) // m * m


def backward_policy_kernel(idx_ref,            # (TILE_M, 1) int32 state indices
                           embed_ref,          # (NR, HP)  bf16 full table (VMEM-resident)
                           w1_ref, b1_ref,     # (HP, HP)  bf16, (1, HP) f32
                           w2_ref, b2_ref,     # (HP, HP)  bf16, (1, HP) f32
                           w3_ref, b3_ref,     # (HP, OP)  bf16, (1, OP) f32
                           out_ref):           # (TILE_M, OP) bf16
    tile_m = idx_ref.shape[0]
    n_rows = embed_ref.shape[0]

    # ---- in-kernel gather: one-hot (TILE_M, NR) @ (NR, HP) on the MXU ------
    # Exact: each gathered element is a single bf16 table entry widened to f32.
    # Out-of-range / negative indices match no row -> zero embedding row.
    idx = idx_ref[...]                                              # (TILE_M, 1)
    row_ids = jax.lax.broadcasted_iota(jnp.int32, (tile_m, n_rows), 1)
    onehot = (row_ids == idx).astype(jnp.bfloat16)                  # (TILE_M, NR)
    x = jnp.dot(onehot, embed_ref[...],
                preferred_element_type=jnp.float32).astype(jnp.bfloat16)

    # ---- 3-layer MLP: bf16 matmuls, f32 accumulation, f32 bias/ReLU --------
    h1 = jnp.dot(x, w1_ref[...], preferred_element_type=jnp.float32) + b1_ref[...]
    h1 = jnp.maximum(h1, 0.0).astype(jnp.bfloat16)
    h2 = jnp.dot(h1, w2_ref[...], preferred_element_type=jnp.float32) + b2_ref[...]
    h2 = jnp.maximum(h2, 0.0).astype(jnp.bfloat16)
    out = jnp.dot(h2, w3_ref[...], preferred_element_type=jnp.float32) + b3_ref[...]
    out_ref[...] = out.astype(out_ref.dtype)


def _choose_tile_m(b):
    """Rows per grid step.

    * b <= 128 : smallest legal tile (multiple of 16 sublanes for the bf16
                 output) — avoids padding a handful of rows out to 128+.
    * b <= 2048: 128 — keeps the grid at >= 2 steps so ("parallel",) can
                 shard across both TensorCores on v7x (no effect on v5e/v6e).
    * larger   : 512 — per-tile compute/DMA dwarfs the ~0.35us per-grid-step
                 pipeline overhead (measured 29%->85% of HBM roofline going
                 128->512 block size on v6e); VMEM stays << limits.
    """
    if b <= 128:
        return max(16, _round_up(b, 16))
    if b <= 2048:
        return 128
    return 512


def backward_policy_forward_batch(s_idx, params, tile_m=None):
    """Evaluate the policy for a batch of state indices -> (B, 3) f32 logits."""
    embed, w1, b1, w2, b2, w3, b3 = params
    n_rows, hp = embed.shape
    op = w3.shape[1]

    s_idx = jnp.asarray(s_idx, dtype=jnp.int32).reshape(-1)
    b = s_idx.shape[0]
    if tile_m is None:
        tile_m = _choose_tile_m(b)
    bp = _round_up(b, tile_m)

    # Pad the batch with index 0; padded rows are computed and sliced away.
    idx = jnp.zeros((bp, 1), jnp.int32).at[:b, 0].set(s_idx)

    flops = 2 * bp * (n_rows * hp + hp * hp + hp * hp + hp * op)
    bytes_accessed = (bp * 4                             # indices (int32)
                      + n_rows * hp * 2                  # embedding table (bf16)
                      + 2 * hp * hp * 2 + hp * op * 2    # weights (bf16)
                      + (2 * hp + op) * 4                # biases (f32)
                      + bp * op * 2)                     # output (bf16)

    grid = (bp // tile_m,)
    out = pl.pallas_call(
        backward_policy_kernel,
        out_shape=jax.ShapeDtypeStruct((bp, op), jnp.bfloat16),
        grid=grid,
        in_specs=[
            pl.BlockSpec((tile_m, 1), lambda i: (i, 0)),      # indices: tiled over batch
            pl.BlockSpec((n_rows, hp), lambda i: (0, 0)),     # embed table: VMEM-resident
            pl.BlockSpec((hp, hp), lambda i: (0, 0)),         # weights: constant -> DMA'd once
            pl.BlockSpec((1, hp), lambda i: (0, 0)),
            pl.BlockSpec((hp, hp), lambda i: (0, 0)),
            pl.BlockSpec((1, hp), lambda i: (0, 0)),
            pl.BlockSpec((hp, op), lambda i: (0, 0)),
            pl.BlockSpec((1, op), lambda i: (0, 0)),
        ],
        out_specs=pl.BlockSpec((tile_m, op), lambda i: (i, 0)),
        compiler_params=pltpu.CompilerParams(
            dimension_semantics=("parallel",)),
        cost_estimate=pl.CostEstimate(
            flops=flops, transcendentals=0, bytes_accessed=bytes_accessed),
    )(idx, embed, w1, b1, w2, b2, w3, b3)

    return out[:b, :3].astype(jnp.float32)


def backward_policy_forward(s, params):
    """PyTorch-equivalent forward(s): single state index -> (1, 3) f32 logits."""
    s_arr = jnp.asarray(s, dtype=jnp.int32).reshape((1,))
    return backward_policy_forward_batch(s_arr, params)


def init_params(key, N, hidden):
    """Raw f32 parameters matching the PyTorch module shapes (weights stored (in, out))."""
    ks = jax.random.split(key, 7)
    embed = jax.random.normal(ks[0], (N + 1, hidden), jnp.float32)
    w1 = jax.random.normal(ks[1], (hidden, hidden), jnp.float32) * 0.1
    b1 = jax.random.normal(ks[2], (1, hidden), jnp.float32) * 0.1
    w2 = jax.random.normal(ks[3], (hidden, hidden), jnp.float32) * 0.1
    b2 = jax.random.normal(ks[4], (1, hidden), jnp.float32) * 0.1
    w3 = jax.random.normal(ks[5], (hidden, 3), jnp.float32) * 0.1
    b3 = jax.random.normal(ks[6], (1, 3), jnp.float32) * 0.1
    return embed, w1, b1, w2, b2, w3, b3


def pack_params(embed, w1, b1, w2, b2, w3, b3, hp=HP, op=OP):
    """Zero-pad to lane-dense widths; weights + table -> bf16, biases stay f32.

    Embedding rows are padded to a multiple of 128 so the in-kernel one-hot
    matrix is lane-dense; padded rows are zero and never selected.
    """
    def pad_to(a, rows, cols):
        return jnp.pad(a, ((0, rows - a.shape[0]), (0, cols - a.shape[1])))

    n_rows = _round_up(embed.shape[0], 128)
    embed_p = pad_to(embed, n_rows, hp).astype(jnp.bfloat16)
    w1_p = pad_to(w1, hp, hp).astype(jnp.bfloat16)
    b1_p = pad_to(b1, 1, hp)
    w2_p = pad_to(w2, hp, hp).astype(jnp.bfloat16)
    b2_p = pad_to(b2, 1, hp)
    w3_p = pad_to(w3, hp, op).astype(jnp.bfloat16)
    b3_p = pad_to(b3, 1, op)
    return embed_p, w1_p, b1_p, w2_p, b2_p, w3_p, b3_p


def reference_forward_batch(s_idx, params):
    """Pure-JAX reference mirroring the kernel's quantization (bf16 weights,
    f32 accumulation, bf16 intermediate/output round-trips)."""
    embed, w1, b1, w2, b2, w3, b3 = params
    f32 = jnp.float32
    dot = functools.partial(jnp.dot, precision=jax.lax.Precision.HIGHEST)
    x = embed[jnp.asarray(s_idx, jnp.int32)].astype(f32)
    h1 = jnp.maximum(dot(x, w1.astype(f32)) + b1, 0.0).astype(jnp.bfloat16).astype(f32)
    h2 = jnp.maximum(dot(h1, w2.astype(f32)) + b2, 0.0).astype(jnp.bfloat16).astype(f32)
    out = (dot(h2, w3.astype(f32)) + b3).astype(jnp.bfloat16).astype(f32)
    return out[:, :3]


if __name__ == "__main__":
    N = 8
    hidden = 64   # PyTorch module default
    key = jax.random.PRNGKey(0)
    raw = init_params(key, N, hidden)
    params = pack_params(*raw)

    # Single-state forward (matches PyTorch forward(s) -> (1, 3)).
    s = 5
    out1 = jax.block_until_ready(backward_policy_forward(s, params))
    ref1 = reference_forward_batch(jnp.asarray([s], jnp.int32), params)
    assert out1.shape == (1, 3), out1.shape
    assert out1.dtype == jnp.float32, out1.dtype
    assert jnp.allclose(out1, ref1, atol=2e-2, rtol=2e-2), (out1, ref1)

    # Batched evaluation: every state in one launch (the perf path).
    s_batch = jnp.arange(N + 1, dtype=jnp.int32)
    out_b = jax.block_until_ready(backward_policy_forward_batch(s_batch, params))
    ref_b = reference_forward_batch(s_batch, params)
    assert out_b.shape == (N + 1, 3), out_b.shape
    assert jnp.allclose(out_b, ref_b, atol=2e-2, rtol=2e-2), (out_b, ref_b)

    print("KERNEL_OK")
</pallas_src>

<mosaic_0001>
module attributes {stable_mosaic.version = 11 : i64} {
  func.func @backward_policy_kernel(%arg0: i32, %arg1: memref<16x1xi32, #tpu.memory_space<vmem>>, %arg2: memref<128x128xbf16, #tpu.memory_space<vmem>>, %arg3: memref<128x128xbf16, #tpu.memory_space<vmem>>, %arg4: memref<1x128xf32, #tpu.memory_space<vmem>>, %arg5: memref<128x128xbf16, #tpu.memory_space<vmem>>, %arg6: memref<1x128xf32, #tpu.memory_space<vmem>>, %arg7: memref<128x128xbf16, #tpu.memory_space<vmem>>, %arg8: memref<1x128xf32, #tpu.memory_space<vmem>>, %arg9: memref<16x128xbf16, #tpu.memory_space<vmem>>) attributes {dimension_semantics = [#tpu.dimension_semantics<parallel>], iteration_bounds = array<i64: 1>, scalar_prefetch = 0 : i64, scratch_operands = 0 : i64, tpu.core_type = #tpu.core_type<tc>, window_params = [{transform_indices = @transform_0, window_bounds = array<i64: 16, 1>}, {pipeline_mode = #tpu.pipeline_mode<synchronous>, transform_indices = @transform_1, window_bounds = array<i64: 128, 128>}, {pipeline_mode = #tpu.pipeline_mode<synchronous>, transform_indices = @transform_2, window_bounds = array<i64: 128, 128>}, {pipeline_mode = #tpu.pipeline_mode<synchronous>, transform_indices = @transform_3, window_bounds = array<i64: 1, 128>}, {pipeline_mode = #tpu.pipeline_mode<synchronous>, transform_indices = @transform_4, window_bounds = array<i64: 128, 128>}, {pipeline_mode = #tpu.pipeline_mode<synchronous>, transform_indices = @transform_5, window_bounds = array<i64: 1, 128>}, {pipeline_mode = #tpu.pipeline_mode<synchronous>, transform_indices = @transform_6, window_bounds = array<i64: 128, 128>}, {pipeline_mode = #tpu.pipeline_mode<synchronous>, transform_indices = @transform_7, window_bounds = array<i64: 1, 128>}, {transform_indices = @transform_8, window_bounds = array<i64: 16, 128>}]} {
    %c0 = arith.constant 0 : index
    %c0_0 = arith.constant 0 : index
    %0 = vector.load %arg1[%c0, %c0_0] : memref<16x1xi32, #tpu.memory_space<vmem>>, vector<16x1xi32>
    %1 = tpu.iota {dimensions = array<i32: 1>} : vector<16x128xi32>
    %2 = vector.broadcast %0 : vector<16x1xi32> to vector<16x128xi32>
    %3 = arith.cmpi eq, %1, %2 : vector<16x128xi32>
    %4 = arith.extui %3 : vector<16x128xi1> to vector<16x128xi32>
    %5 = arith.sitofp %4 : vector<16x128xi32> to vector<16x128xf32>
    %6 = arith.truncf %5 : vector<16x128xf32> to vector<16x128xbf16>
    %c0_1 = arith.constant 0 : index
    %c0_2 = arith.constant 0 : index
    %7 = vector.load %arg2[%c0_1, %c0_2] : memref<128x128xbf16, #tpu.memory_space<vmem>>, vector<128x128xbf16>
    %cst = arith.constant dense<0.000000e+00> : vector<16x128xf32>
    %8 = tpu.matmul %6, %7, %cst {dimension_numbers = #tpu.dot_dimension_numbers<[1], [0], [0], [1], [0, 0, 1, 1], [], []>} : vector<16x128xbf16>, vector<128x128xbf16>, vector<16x128xf32> -> vector<16x128xf32>
    %9 = arith.truncf %8 : vector<16x128xf32> to vector<16x128xbf16>
    %c0_3 = arith.constant 0 : index
    %c0_4 = arith.constant 0 : index
    %10 = vector.load %arg3[%c0_3, %c0_4] : memref<128x128xbf16, #tpu.memory_space<vmem>>, vector<128x128xbf16>
    %cst_5 = arith.constant dense<0.000000e+00> : vector<16x128xf32>
    %11 = tpu.matmul %9, %10, %cst_5 {dimension_numbers = #tpu.dot_dimension_numbers<[1], [0], [0], [1], [0, 0, 1, 1], [], []>} : vector<16x128xbf16>, vector<128x128xbf16>, vector<16x128xf32> -> vector<16x128xf32>
    %c0_6 = arith.constant 0 : index
    %c0_7 = arith.constant 0 : index
    %12 = vector.load %arg4[%c0_6, %c0_7] : memref<1x128xf32, #tpu.memory_space<vmem>>, vector<1x128xf32>
    %13 = vector.broadcast %12 : vector<1x128xf32> to vector<16x128xf32>
    %14 = arith.addf %11, %13 : vector<16x128xf32>
    %cst_8 = arith.constant 0.000000e+00 : f32
    %15 = vector.broadcast %cst_8 : f32 to vector<16x128xf32>
    %16 = arith.maximumf %14, %15 : vector<16x128xf32>
    %17 = arith.truncf %16 : vector<16x128xf32> to vector<16x128xbf16>
    %c0_9 = arith.constant 0 : index
    %c0_10 = arith.constant 0 : index
    %18 = vector.load %arg5[%c0_9, %c0_10] : memref<128x128xbf16, #tpu.memory_space<vmem>>, vector<128x128xbf16>
    %cst_11 = arith.constant dense<0.000000e+00> : vector<16x128xf32>
    %19 = tpu.matmul %17, %18, %cst_11 {dimension_numbers = #tpu.dot_dimension_numbers<[1], [0], [0], [1], [0, 0, 1, 1], [], []>} : vector<16x128xbf16>, vector<128x128xbf16>, vector<16x128xf32> -> vector<16x128xf32>
    %c0_12 = arith.constant 0 : index
    %c0_13 = arith.constant 0 : index
    %20 = vector.load %arg6[%c0_12, %c0_13] : memref<1x128xf32, #tpu.memory_space<vmem>>, vector<1x128xf32>
    %21 = vector.broadcast %20 : vector<1x128xf32> to vector<16x128xf32>
    %22 = arith.addf %19, %21 : vector<16x128xf32>
    %cst_14 = arith.constant 0.000000e+00 : f32
    %23 = vector.broadcast %cst_14 : f32 to vector<16x128xf32>
    %24 = arith.maximumf %22, %23 : vector<16x128xf32>
    %25 = arith.truncf %24 : vector<16x128xf32> to vector<16x128xbf16>
    %c0_15 = arith.constant 0 : index
    %c0_16 = arith.constant 0 : index
    %26 = vector.load %arg7[%c0_15, %c0_16] : memref<128x128xbf16, #tpu.memory_space<vmem>>, vector<128x128xbf16>
    %cst_17 = arith.constant dense<0.000000e+00> : vector<16x128xf32>
    %27 = tpu.matmul %25, %26, %cst_17 {dimension_numbers = #tpu.dot_dimension_numbers<[1], [0], [0], [1], [0, 0, 1, 1], [], []>} : vector<16x128xbf16>, vector<128x128xbf16>, vector<16x128xf32> -> vector<16x128xf32>
    %c0_18 = arith.constant 0 : index
    %c0_19 = arith.constant 0 : index
    %28 = vector.load %arg8[%c0_18, %c0_19] : memref<1x128xf32, #tpu.memory_space<vmem>>, vector<1x128xf32>
    %29 = vector.broadcast %28 : vector<1x128xf32> to vector<16x128xf32>
    %30 = arith.addf %27, %29 : vector<16x128xf32>
    %31 = arith.truncf %30 : vector<16x128xf32> to vector<16x128xbf16>
    %c0_20 = arith.constant 0 : index
    %c0_21 = arith.constant 0 : index
    %32 = vector.load %arg9[%c0_20, %c0_21] : memref<16x128xbf16, #tpu.memory_space<vmem>>, vector<16x128xbf16>
    tpu.vector_store %arg9[%c0_20, %c0_21], %31 {strides = array<i32>} : memref<16x128xbf16, #tpu.memory_space<vmem>>, vector<16x128xbf16>,
    return
  }
  func.func @transform_0(%arg0: i32) -> (i32, i32) {
    %c0_i32 = arith.constant 0 : i32
    %c0_i32_0 = arith.constant 0 : i32
    return %arg0, %c0_i32 : i32, i32
  }
  func.func @transform_1(%arg0: i32) -> (i32, i32) {
    %c0_i32 = arith.constant 0 : i32
    %c0_i32_0 = arith.constant 0 : i32
    %c0_i32_1 = arith.constant 0 : i32
    return %c0_i32, %c0_i32_0 : i32, i32
  }
  func.func @transform_2(%arg0: i32) -> (i32, i32) {
    %c0_i32 = arith.constant 0 : i32
    %c0_i32_0 = arith.constant 0 : i32
    %c0_i32_1 = arith.constant 0 : i32
    return %c0_i32, %c0_i32_0 : i32, i32
  }
  func.func @transform_3(%arg0: i32) -> (i32, i32) {
    %c0_i32 = arith.constant 0 : i32
    %c0_i32_0 = arith.constant 0 : i32
    %c0_i32_1 = arith.constant 0 : i32
    return %c0_i32, %c0_i32_0 : i32, i32
  }
  func.func @transform_4(%arg0: i32) -> (i32, i32) {
    %c0_i32 = arith.constant 0 : i32
    %c0_i32_0 = arith.constant 0 : i32
    %c0_i32_1 = arith.constant 0 : i32
    return %c0_i32, %c0_i32_0 : i32, i32
  }
  func.func @transform_5(%arg0: i32) -> (i32, i32) {
    %c0_i32 = arith.constant 0 : i32
    %c0_i32_0 = arith.constant 0 : i32
    %c0_i32_1 = arith.constant 0 : i32
    return %c0_i32, %c0_i32_0 : i32, i32
  }
  func.func @transform_6(%arg0: i32) -> (i32, i32) {
    %c0_i32 = arith.constant 0 : i32
    %c0_i32_0 = arith.constant 0 : i32
    %c0_i32_1 = arith.constant 0 : i32
    return %c0_i32, %c0_i32_0 : i32, i32
  }
  func.func @transform_7(%arg0: i32) -> (i32, i32) {
    %c0_i32 = arith.constant 0 : i32
    %c0_i32_0 = arith.constant 0 : i32
    %c0_i32_1 = arith.constant 0 : i32
    return %c0_i32, %c0_i32_0 : i32, i32
  }
  func.func @transform_8(%arg0: i32) -> (i32, i32) {
    %c0_i32 = arith.constant 0 : i32
    %c0_i32_0 = arith.constant 0 : i32
    return %arg0, %c0_i32 : i32, i32
  }
}

</mosaic_0001>

<llo_original>
// kernel: tpu_custom_call.1
$region0: #{tpu_custom_call.1}
  #allocation0 [shape = 'u32[]', space=smem, size = 0x4, offset = 0x4, fixed_abs, tag = 'smem constant byte address 0x4 - core index']
  #allocation1 [shape = 'u32[144,128]{1,0:T(1,128)}', space=vmem, size = 0x12000, scoped, tag = 'internal scratch']
  %s0 = inlined_call_operand.vmem [shape: s32[16,1], index: 0, kind: input, shape index: {}]
  %s1 = inlined_call_operand.hbm [shape: bf16[128,128], index: 1, kind: input, shape index: {}]
  %s2 = inlined_call_operand.hbm [shape: bf16[128,128], index: 2, kind: input, shape index: {}]
  %s3 = inlined_call_operand.vmem [shape: f32[1,128], index: 3, kind: input, shape index: {}]
  %s4 = inlined_call_operand.hbm [shape: bf16[128,128], index: 4, kind: input, shape index: {}]
  %s5 = inlined_call_operand.vmem [shape: f32[1,128], index: 5, kind: input, shape index: {}]
  %s6 = inlined_call_operand.hbm [shape: bf16[128,128], index: 6, kind: input, shape index: {}]
  %s7 = inlined_call_operand.vmem [shape: f32[1,128], index: 7, kind: input, shape index: {}]
  %s8 = inlined_call_operand.hbm [shape: bf16[16,128], index: 8, kind: output, shape index: {}]
  %s9 = sld [smem:[#allocation0]]
  $region58: #{tpu_custom_call.1} parent=0
    _
  %s11 = ssub.s32 1, %s9
  %s12 = scalar_select 0, %s11, %s9
  $region1: #{tpu_custom_call.1} parent=0
    #allocation2 [shape = 'u8[32768]{0}', space=vmem, size = 0x8000, scoped, tag = 'input window, operand 1, single buffered']
    #allocation3 [shape = 's32[1]{0}', space=sflag, size = 0x4, scoped, tag = 'scoped memory for tpu_custom_call.1']
    #allocation4 [shape = 's32[1]{0}', space=sflag, size = 0x4, scoped, tag = 'scoped memory for tpu_custom_call.1']
    #allocation5 [shape = 'u8[32768]{0}', space=vmem, size = 0x8000, scoped, tag = 'input window, operand 2, single buffered']
    #allocation6 [shape = 's32[1]{0}', space=sflag, size = 0x4, scoped, tag = 'scoped memory for tpu_custom_call.1']
    #allocation7 [shape = 'u8[32768]{0}', space=vmem, size = 0x8000, scoped, tag = 'input window, operand 4, single buffered']
    #allocation8 [shape = 'u8[32768]{0}', space=vmem, size = 0x8000, scoped, tag = 'input window, operand 6, single buffered']
    #allocation9 [shape = 's32[1]{0}', space=sflag, size = 0x4, scoped, tag = 'scoped memory for tpu_custom_call.1']
    #allocation10 [shape = 'u8[4096]{0}', space=vmem, size = 0x1000, scoped, tag = 'output window, operand 0, single buffered']
    %13 = vsyncpa [#allocation3], 0
    %14 = vsyncpa [#allocation6], 0
    %15 = vsyncpa [#allocation9], 0
    %16 = vsyncpa [#allocation4], 0
    // Predicated region
    $region2: #{tpu_custom_call.1} parent=1 // pred_check
      _
    $region3: #{tpu_custom_call.1} parent=1 // pred_check_branch
      %18 = sbr.rel (0) target = $region5
    $region4: #{tpu_custom_call.1} parent=1 // pred_region
      _
    $region5: #{tpu_custom_call.1} parent=1 // pred_fallthru
      _
    // Predicated region
    $region6: #{tpu_custom_call.1} parent=1 // pred_check
      _
    $region7: #{tpu_custom_call.1} parent=1 // pred_check_branch
      %20 = sbr.rel (0) target = $region9
    $region8: #{tpu_custom_call.1} parent=1 // pred_region
      %s22 = ssub.s32 1024, 1024
      %23 = vsyncadd [#allocation3], %s22
      %s24 = sshll.u32 [#allocation2], 4
      %s25 = int_to_ptr.vmem [resolvable:$true] %s24
      %30 = dma.hbm_to_vmem [thread:$0]  %s1, 1024, %s25, [#allocation3], 64, 64, 4
    $region9: #{tpu_custom_call.1} parent=1 // pred_fallthru
      _
    // Predicated region
    $region10: #{tpu_custom_call.1} parent=1 // pred_check
      _
    $region11: #{tpu_custom_call.1} parent=1 // pred_check_branch
      %32 = sbr.rel (0) target = $region13
    $region12: #{tpu_custom_call.1} parent=1 // pred_region
      %s34 = ssub.s32 1024, 1024
      %35 = vsyncadd [#allocation6], %s34
      %s36 = sshll.u32 [#allocation5], 4
      %s37 = int_to_ptr.vmem [resolvable:$true] %s36
      %42 = dma.hbm_to_vmem [thread:$0]  %s2, 1024, %s37, [#allocation6], 64, 64, 4
    $region13: #{tpu_custom_call.1} parent=1 // pred_fallthru
      _
    // Predicated region
    $region14: #{tpu_custom_call.1} parent=1 // pred_check
      _
    $region15: #{tpu_custom_call.1} parent=1 // pred_check_branch
      %44 = sbr.rel (0) target = $region17
    $region16: #{tpu_custom_call.1} parent=1 // pred_region
      _
    $region17: #{tpu_custom_call.1} parent=1 // pred_fallthru
      _
    // Predicated region
    $region18: #{tpu_custom_call.1} parent=1 // pred_check
      _
    $region19: #{tpu_custom_call.1} parent=1 // pred_check_branch
      %46 = sbr.rel (0) target = $region21
    $region20: #{tpu_custom_call.1} parent=1 // pred_region
      %s48 = ssub.s32 1024, 1024
      %49 = vsyncadd [#allocation6], %s48
      %s50 = sshll.u32 [#allocation7], 4
      %s51 = int_to_ptr.vmem [resolvable:$true] %s50
      %56 = dma.hbm_to_vmem [thread:$0]  %s4, 1024, %s51, [#allocation6], 64, 64, 4
    $region21: #{tpu_custom_call.1} parent=1 // pred_fallthru
      _
    // Predicated region
    $region22: #{tpu_custom_call.1} parent=1 // pred_check
      _
    $region23: #{tpu_custom_call.1} parent=1 // pred_check_branch
      %58 = sbr.rel (0) target = $region25
    $region24: #{tpu_custom_call.1} parent=1 // pred_region
      _
    $region25: #{tpu_custom_call.1} parent=1 // pred_fallthru
      _
    // Predicated region
    $region26: #{tpu_custom_call.1} parent=1 // pred_check
      _
    $region27: #{tpu_custom_call.1} parent=1 // pred_check_branch
      %60 = sbr.rel (0) target = $region29
    $region28: #{tpu_custom_call.1} parent=1 // pred_region
      %s62 = ssub.s32 1024, 1024
      %63 = vsyncadd [#allocation9], %s62
      %s64 = sshll.u32 [#allocation8], 4
      %s65 = int_to_ptr.vmem [resolvable:$true] %s64
      %70 = dma.hbm_to_vmem [thread:$0]  %s6, 1024, %s65, [#allocation9], 64, 64, 4
    $region29: #{tpu_custom_call.1} parent=1 // pred_fallthru
      _
    // Predicated region
    $region30: #{tpu_custom_call.1} parent=1 // pred_check
      _
    $region31: #{tpu_custom_call.1} parent=1 // pred_check_branch
      %72 = sbr.rel (0) target = $region33
    $region32: #{tpu_custom_call.1} parent=1 // pred_region
      _
    $region33: #{tpu_custom_call.1} parent=1 // pred_fallthru
      _
    // Predicated region
    $region34: #{tpu_custom_call.1} parent=1 // pred_check
      _
    $region35: #{tpu_custom_call.1} parent=1 // pred_check_branch
      %74 = sbr.rel (0) target = $region37
    $region36: #{tpu_custom_call.1} parent=1 // pred_region
      %75 = dma.done [#allocation3], 1024
    $region37: #{tpu_custom_call.1} parent=1 // pred_fallthru
      _
    // Predicated region
    $region38: #{tpu_custom_call.1} parent=1 // pred_check
      _
    $region39: #{tpu_custom_call.1} parent=1 // pred_check_branch
      %77 = sbr.rel (0) target = $region41
    $region40: #{tpu_custom_call.1} parent=1 // pred_region
      %78 = dma.done [#allocation6], 1024
    $region41: #{tpu_custom_call.1} parent=1 // pred_fallthru
      _
    // Predicated region
    $region42: #{tpu_custom_call.1} parent=1 // pred_check
      _
    $region43: #{tpu_custom_call.1} parent=1 // pred_check_branch
      %80 = sbr.rel (0) target = $region45
    $region44: #{tpu_custom_call.1} parent=1 // pred_region
      %81 = dma.done [#allocation6], 1024
    $region45: #{tpu_custom_call.1} parent=1 // pred_fallthru
      _
    // Predicated region
    $region46: #{tpu_custom_call.1} parent=1 // pred_check
      _
    $region47: #{tpu_custom_call.1} parent=1 // pred_check_branch
      %83 = sbr.rel (0) target = $region49
    $region48: #{tpu_custom_call.1} parent=1 // pred_region
      %84 = dma.done [#allocation9], 1024
    $region49: #{tpu_custom_call.1} parent=1 // pred_fallthru
      _
    %v86 = vld [vmem:[%s0] sm:$0xff]
    %v87 = vld [vmem:[%s0 + $0x8] sm:$0xff]
    %v88 = vlaneseq
    %v89 = vand.u32 %v88, 127
    %90 = vset.pattern.permute.xlu0 0
    %91 = vperm.xlu0 %90, %v86
    %v92 = vpop.permute.xlu0 %91
    %93 = vset.pattern.permute.xlu0 0
    %94 = vperm.xlu0 %93, %v87
    %v95 = vpop.permute.xlu0 %94
    %vm96 = vcmp.eq.s32.totalorder %v89, %v92
    %vm97 = vcmp.eq.s32.totalorder %v89, %v95
    %v98 = vsel %vm96, 1, 0
    %v99 = vsel %vm97, 1, 0
    %v100 = vcvt.s32.f32 %v98
    %v101 = vcvt.s32.f32 %v99
    %v102 = vpack.c.bf16 %v101, %v100
    %v103 = vld [vmem:[#allocation2] sm:$0xf]
    %v104 = vld [vmem:[#allocation2 + $0x4] sm:$0xf]
    %v105 = vld [vmem:[#allocation2 + $0x8] sm:$0xf]
    %v106 = vld [vmem:[#allocation2 + $0xc] sm:$0xf]
    %v107 = vld [vmem:[#allocation2 + $0x10] sm:$0xf]
    %v108 = vld [vmem:[#allocation2 + $0x14] sm:$0xf]
    %v109 = vld [vmem:[#allocation2 + $0x18] sm:$0xf]
    %v110 = vld [vmem:[#allocation2 + $0x1c] sm:$0xf]
    %v111 = vld [vmem:[#allocation2 + $0x20] sm:$0xf]
    %v112 = vld [vmem:[#allocation2 + $0x24] sm:$0xf]
    %v113 = vld [vmem:[#allocation2 + $0x28] sm:$0xf]
    %v114 = vld [vmem:[#allocation2 + $0x2c] sm:$0xf]
    %v115 = vld [vmem:[#allocation2 + $0x30] sm:$0xf]
    %v116 = vld [vmem:[#allocation2 + $0x34] sm:$0xf]
    %v117 = vld [vmem:[#allocation2 + $0x38] sm:$0xf]
    %v118 = vld [vmem:[#allocation2 + $0x3c] sm:$0xf]
    %v135 = vunpack.c.l.b16 %v103
    %v136 = vunpack.c.l.b16 %v104
    %v137 = vunpack.c.l.b16 %v105
    %v138 = vunpack.c.l.b16 %v106
    %v139 = vunpack.c.l.b16 %v107
    %v140 = vunpack.c.l.b16 %v108
    %v141 = vunpack.c.l.b16 %v109
    %v142 = vunpack.c.l.b16 %v110
    %v143 = vunpack.c.l.b16 %v111
    %v144 = vunpack.c.l.b16 %v112
    %v145 = vunpack.c.l.b16 %v113
    %v146 = vunpack.c.l.b16 %v114
    %v147 = vunpack.c.l.b16 %v115
    %v148 = vunpack.c.l.b16 %v116
    %v149 = vunpack.c.l.b16 %v117
    %v150 = vunpack.c.l.b16 %v118
    %v151 = vpack.c.b16 %v136, %v135
    %v152 = vpack.c.b16 %v138, %v137
    %v153 = vpack.c.b16 %v140, %v139
    %v154 = vpack.c.b16 %v142, %v141
    %v155 = vpack.c.b16 %v144, %v143
    %v156 = vpack.c.b16 %v146, %v145
    %v157 = vpack.c.b16 %v148, %v147
    %v158 = vpack.c.b16 %v150, %v149
    %167 = vmatprep.subr.bf16.mxu0 0
    %168 = vmatpush1.bf16.msra.mxu0 %v151
    %169 = vmatprep.subr.bf16.mxu0 0
    %170 = vmatpush1.bf16.msra.mxu0 %v152
    %171 = vmatprep.subr.bf16.mxu0 0
    %172 = vmatpush1.bf16.msra.mxu0 %v153
    %173 = vmatprep.subr.bf16.mxu0 0
    %174 = vmatpush1.bf16.msra.mxu0 %v154
    %175 = vmatprep.subr.bf16.mxu0 0
    %176 = vmatpush1.bf16.msra.mxu0 %v155
    %177 = vmatprep.subr.bf16.mxu0 0
    %178 = vmatpush1.bf16.msra.mxu0 %v156
    %179 = vmatprep.subr.bf16.mxu0 0
    %180 = vmatpush1.bf16.msra.mxu0 %v157
    %181 = vmatprep.subr.bf16.mxu0 0
    %182 = vmatpush1.bf16.msra.mxu0 %v158
    %183 = vmatprep.subr.bf16.mxu0 0
    %184 = vmatpush1.bf16.msra.mxu0 0
    %185 = vmatprep.subr.bf16.mxu0 0
    %186 = vmatpush1.bf16.msra.mxu0 0
    %187 = vmatprep.subr.bf16.mxu0 0
    %188 = vmatpush1.bf16.msra.mxu0 0
    %189 = vmatprep.subr.bf16.mxu0 0
    %190 = vmatpush1.bf16.msra.mxu0 0
    %191 = vmatprep.subr.bf16.mxu0 0
    %192 = vmatpush1.bf16.msra.mxu0 0
    %193 = vmatprep.subr.bf16.mxu0 0
    %194 = vmatpush1.bf16.msra.mxu0 0
    %195 = vmatprep.subr.bf16.mxu0 0
    %196 = vmatpush1.bf16.msra.mxu0 0
    %197 = vmatprep.subr.bf16.mxu0 0
    %198 = vmatpush1.bf16.msra.mxu0 0
    %199 = vmatprep.mubr.bf16.mxu0 0
    %200 = vmatmul.mubr.bf16.gmra.mrb[0].mxu0 %v102
    %v201 = vpop.f32.mrb[0].mxu0
    %v202 = vadd.f32 0.0, %v201
    %v203 = vpop.f32.mrb[0].mxu0
    %v204 = vpop.f32.mrb[0].mxu0
    %v205 = vadd.f32 0.0, %v204
    %v206 = vpop.f32.mrb[0].mxu0
    %207 = vdwg.mxu0
    %v208 = vpack.c.bf16 %v205, %v202
    %v209 = vld [vmem:[#allocation5] sm:$0xf]
    %v210 = vld [vmem:[#allocation5 + $0x4] sm:$0xf]
    %v211 = vld [vmem:[#allocation5 + $0x8] sm:$0xf]
    %v212 = vld [vmem:[#allocation5 + $0xc] sm:$0xf]
    %v213 = vld [vmem:[#allocation5 + $0x10] sm:$0xf]
    %v214 = vld [vmem:[#allocation5 + $0x14] sm:$0xf]
    %v215 = vld [vmem:[#allocation5 + $0x18] sm:$0xf]
    %v216 = vld [vmem:[#allocation5 + $0x1c] sm:$0xf]
    %v217 = vld [vmem:[#allocation5 + $0x20] sm:$0xf]
    %v218 = vld [vmem:[#allocation5 + $0x24] sm:$0xf]
    %v219 = vld [vmem:[#allocation5 + $0x28] sm:$0xf]
    %v220 = vld [vmem:[#allocation5 + $0x2c] sm:$0xf]
    %v221 = vld [vmem:[#allocation5 + $0x30] sm:$0xf]
    %v222 = vld [vmem:[#allocation5 + $0x34] sm:$0xf]
    %v223 = vld [vmem:[#allocation5 + $0x38] sm:$0xf]
    %v224 = vld [vmem:[#allocation5 + $0x3c] sm:$0xf]
    %v225 = vld [vmem:[%s3] sm:$0x1]
    %v227 = vlaneseq
    %v228 = vshrl.u32 %v227, 7
    %v229 = vsub.s32 0, %v228
    %v230 = vrot.slane %v225, %v229
    %v248 = vunpack.c.l.b16 %v209
    %v249 = vunpack.c.l.b16 %v210
    %v250 = vunpack.c.l.b16 %v211
    %v251 = vunpack.c.l.b16 %v212
    %v252 = vunpack.c.l.b16 %v213
    %v253 = vunpack.c.l.b16 %v214
    %v254 = vunpack.c.l.b16 %v215
    %v255 = vunpack.c.l.b16 %v216
    %v256 = vunpack.c.l.b16 %v217
    %v257 = vunpack.c.l.b16 %v218
    %v258 = vunpack.c.l.b16 %v219
    %v259 = vunpack.c.l.b16 %v220
    %v260 = vunpack.c.l.b16 %v221
    %v261 = vunpack.c.l.b16 %v222
    %v262 = vunpack.c.l.b16 %v223
    %v263 = vunpack.c.l.b16 %v224
    %v264 = vpack.c.b16 %v249, %v248
    %v265 = vpack.c.b16 %v251, %v250
    %v266 = vpack.c.b16 %v253, %v252
    %v267 = vpack.c.b16 %v255, %v254
    %v268 = vpack.c.b16 %v257, %v256
    %v269 = vpack.c.b16 %v259, %v258
    %v270 = vpack.c.b16 %v261, %v260
    %v271 = vpack.c.b16 %v263, %v262
    %280 = vmatprep.subr.bf16.mxu0 0
    %281 = vmatpush1.bf16.msra.mxu0 %v264
    %282 = vmatprep.subr.bf16.mxu0 0
    %283 = vmatpush1.bf16.msra.mxu0 %v265
    %284 = vmatprep.subr.bf16.mxu0 0
    %285 = vmatpush1.bf16.msra.mxu0 %v266
    %286 = vmatprep.subr.bf16.mxu0 0
    %287 = vmatpush1.bf16.msra.mxu0 %v267
    %288 = vmatprep.subr.bf16.mxu0 0
    %289 = vmatpush1.bf16.msra.mxu0 %v268
    %290 = vmatprep.subr.bf16.mxu0 0
    %291 = vmatpush1.bf16.msra.mxu0 %v269
    %292 = vmatprep.subr.bf16.mxu0 0
    %293 = vmatpush1.bf16.msra.mxu0 %v270
    %294 = vmatprep.subr.bf16.mxu0 0
    %295 = vmatpush1.bf16.msra.mxu0 %v271
    %296 = vmatprep.subr.bf16.mxu0 0
    %297 = vmatpush1.bf16.msra.mxu0 0
    %298 = vmatprep.subr.bf16.mxu0 0
    %299 = vmatpush1.bf16.msra.mxu0 0
    %300 = vmatprep.subr.bf16.mxu0 0
    %301 = vmatpush1.bf16.msra.mxu0 0
    %302 = vmatprep.subr.bf16.mxu0 0
    %303 = vmatpush1.bf16.msra.mxu0 0
    %304 = vmatprep.subr.bf16.mxu0 0
    %305 = vmatpush1.bf16.msra.mxu0 0
    %306 = vmatprep.subr.bf16.mxu0 0
    %307 = vmatpush1.bf16.msra.mxu0 0
    %308 = vmatprep.subr.bf16.mxu0 0
    %309 = vmatpush1.bf16.msra.mxu0 0
    %310 = vmatprep.subr.bf16.mxu0 0
    %311 = vmatpush1.bf16.msra.mxu0 0
    %312 = vmatprep.mubr.bf16.mxu0 0
    %313 = vmatmul.mubr.bf16.gmra.mrb[0].mxu0 %v208
    %v314 = vpop.f32.mrb[0].mxu0
    %v315 = vadd.f32 %v230, %v314
    %v316 = vpop.f32.mrb[0].mxu0
    %v317 = vpop.f32.mrb[0].mxu0
    %v318 = vadd.f32 %v230, %v317
    %v319 = vpop.f32.mrb[0].mxu0
    %320 = vdwg.mxu0
    %v321 = vmax.f32 %v315, 0.0
    %v322 = vmax.f32 %v318, 0.0
    %v323 = vpack.c.bf16 %v322, %v321
    %v324 = vld [vmem:[#allocation7] sm:$0xf]
    %v325 = vld [vmem:[#allocation7 + $0x4] sm:$0xf]
    %v326 = vld [vmem:[#allocation7 + $0x8] sm:$0xf]
    %v327 = vld [vmem:[#allocation7 + $0xc] sm:$0xf]
    %v328 = vld [vmem:[#allocation7 + $0x10] sm:$0xf]
    %v329 = vld [vmem:[#allocation7 + $0x14] sm:$0xf]
    %v330 = vld [vmem:[#allocation7 + $0x18] sm:$0xf]
    %v331 = vld [vmem:[#allocation7 + $0x1c] sm:$0xf]
    %v332 = vld [vmem:[#allocation7 + $0x20] sm:$0xf]
    %v333 = vld [vmem:[#allocation7 + $0x24] sm:$0xf]
    %v334 = vld [vmem:[#allocation7 + $0x28] sm:$0xf]
    %v335 = vld [vmem:[#allocation7 + $0x2c] sm:$0xf]
    %v336 = vld [vmem:[#allocation7 + $0x30] sm:$0xf]
    %v337 = vld [vmem:[#allocation7 + $0x34] sm:$0xf]
    %v338 = vld [vmem:[#allocation7 + $0x38] sm:$0xf]
    %v339 = vld [vmem:[#allocation7 + $0x3c] sm:$0xf]
    %v340 = vld [vmem:[%s5] sm:$0x1]
    %v342 = vlaneseq
    %v343 = vshrl.u32 %v342, 7
    %v344 = vsub.s32 0, %v343
    %v345 = vrot.slane %v340, %v344
    %v363 = vunpack.c.l.b16 %v324
    %v364 = vunpack.c.l.b16 %v325
    %v365 = vunpack.c.l.b16 %v326
    %v366 = vunpack.c.l.b16 %v327
    %v367 = vunpack.c.l.b16 %v328
    %v368 = vunpack.c.l.b16 %v329
    %v369 = vunpack.c.l.b16 %v330
    %v370 = vunpack.c.l.b16 %v331
    %v371 = vunpack.c.l.b16 %v332
    %v372 = vunpack.c.l.b16 %v333
    %v373 = vunpack.c.l.b16 %v334
    %v374 = vunpack.c.l.b16 %v335
    %v375 = vunpack.c.l.b16 %v336
    %v376 = vunpack.c.l.b16 %v337
    %v377 = vunpack.c.l.b16 %v338
    %v378 = vunpack.c.l.b16 %v339
    %v379 = vpack.c.b16 %v364, %v363
    %v380 = vpack.c.b16 %v366, %v365
    %v381 = vpack.c.b16 %v368, %v367
    %v382 = vpack.c.b16 %v370, %v369
    %v383 = vpack.c.b16 %v372, %v371
    %v384 = vpack.c.b16 %v374, %v373
    %v385 = vpack.c.b16 %v376, %v375
    %v386 = vpack.c.b16 %v378, %v377
    %395 = vmatprep.subr.bf16.mxu0 0
    %396 = vmatpush1.bf16.msra.mxu0 %v379
    %397 = vmatprep.subr.bf16.mxu0 0
    %398 = vmatpush1.bf16.msra.mxu0 %v380
    %399 = vmatprep.subr.bf16.mxu0 0
    %400 = vmatpush1.bf16.msra.mxu0 %v381
    %401 = vmatprep.subr.bf16.mxu0 0
    %402 = vmatpush1.bf16.msra.mxu0 %v382
    %403 = vmatprep.subr.bf16.mxu0 0
    %404 = vmatpush1.bf16.msra.mxu0 %v383
    %405 = vmatprep.subr.bf16.mxu0 0
    %406 = vmatpush1.bf16.msra.mxu0 %v384
    %407 = vmatprep.subr.bf16.mxu0 0
    %408 = vmatpush1.bf16.msra.mxu0 %v385
    %409 = vmatprep.subr.bf16.mxu0 0
    %410 = vmatpush1.bf16.msra.mxu0 %v386
    %411 = vmatprep.subr.bf16.mxu0 0
    %412 = vmatpush1.bf16.msra.mxu0 0
    %413 = vmatprep.subr.bf16.mxu0 0
    %414 = vmatpush1.bf16.msra.mxu0 0
    %415 = vmatprep.subr.bf16.mxu0 0
    %416 = vmatpush1.bf16.msra.mxu0 0
    %417 = vmatprep.subr.bf16.mxu0 0
    %418 = vmatpush1.bf16.msra.mxu0 0
    %419 = vmatprep.subr.bf16.mxu0 0
    %420 = vmatpush1.bf16.msra.mxu0 0
    %421 = vmatprep.subr.bf16.mxu0 0
    %422 = vmatpush1.bf16.msra.mxu0 0
    %423 = vmatprep.subr.bf16.mxu0 0
    %424 = vmatpush1.bf16.msra.mxu0 0
    %425 = vmatprep.subr.bf16.mxu0 0
    %426 = vmatpush1.bf16.msra.mxu0 0
    %427 = vmatprep.mubr.bf16.mxu0 0
    %428 = vmatmul.mubr.bf16.gmra.mrb[0].mxu0 %v323
    %v429 = vpop.f32.mrb[0].mxu0
    %v430 = vadd.f32 %v345, %v429
    %v431 = vpop.f32.mrb[0].mxu0
    %v432 = vpop.f32.mrb[0].mxu0
    %v433 = vadd.f32 %v345, %v432
    %v434 = vpop.f32.mrb[0].mxu0
    %435 = vdwg.mxu0
    %v436 = vmax.f32 %v430, 0.0
    %v437 = vmax.f32 %v433, 0.0
    %v438 = vpack.c.bf16 %v437, %v436
    %v439 = vld [vmem:[#allocation8] sm:$0xf]
    %v440 = vld [vmem:[#allocation8 + $0x4] sm:$0xf]
    %v441 = vld [vmem:[#allocation8 + $0x8] sm:$0xf]
    %v442 = vld [vmem:[#allocation8 + $0xc] sm:$0xf]
    %v443 = vld [vmem:[#allocation8 + $0x10] sm:$0xf]
    %v444 = vld [vmem:[#allocation8 + $0x14] sm:$0xf]
    %v445 = vld [vmem:[#allocation8 + $0x18] sm:$0xf]
    %v446 = vld [vmem:[#allocation8 + $0x1c] sm:$0xf]
    %v447 = vld [vmem:[#allocation8 + $0x20] sm:$0xf]
    %v448 = vld [vmem:[#allocation8 + $0x24] sm:$0xf]
    %v449 = vld [vmem:[#allocation8 + $0x28] sm:$0xf]
    %v450 = vld [vmem:[#allocation8 + $0x2c] sm:$0xf]
    %v451 = vld [vmem:[#allocation8 + $0x30] sm:$0xf]
    %v452 = vld [vmem:[#allocation8 + $0x34] sm:$0xf]
    %v453 = vld [vmem:[#allocation8 + $0x38] sm:$0xf]
    %v454 = vld [vmem:[#allocation8 + $0x3c] sm:$0xf]
    %v455 = vld [vmem:[%s7] sm:$0x1]
    %v457 = vlaneseq
    %v458 = vshrl.u32 %v457, 7
    %v459 = vsub.s32 0, %v458
    %v460 = vrot.slane %v455, %v459
    %v478 = vunpack.c.l.b16 %v439
    %v479 = vunpack.c.l.b16 %v440
    %v480 = vunpack.c.l.b16 %v441
    %v481 = vunpack.c.l.b16 %v442
    %v482 = vunpack.c.l.b16 %v443
    %v483 = vunpack.c.l.b16 %v444
    %v484 = vunpack.c.l.b16 %v445
    %v485 = vunpack.c.l.b16 %v446
    %v486 = vunpack.c.l.b16 %v447
    %v487 = vunpack.c.l.b16 %v448
    %v488 = vunpack.c.l.b16 %v449
    %v489 = vunpack.c.l.b16 %v450
    %v490 = vunpack.c.l.b16 %v451
    %v491 = vunpack.c.l.b16 %v452
    %v492 = vunpack.c.l.b16 %v453
    %v493 = vunpack.c.l.b16 %v454
    %v494 = vpack.c.b16 %v479, %v478
    %v495 = vpack.c.b16 %v481, %v480
    %v496 = vpack.c.b16 %v483, %v482
    %v497 = vpack.c.b16 %v485, %v484
    %v498 = vpack.c.b16 %v487, %v486
    %v499 = vpack.c.b16 %v489, %v488
    %v500 = vpack.c.b16 %v491, %v490
    %v501 = vpack.c.b16 %v493, %v492
    %510 = vmatprep.subr.bf16.mxu0 0
    %511 = vmatpush1.bf16.msra.mxu0 %v494
    %512 = vmatprep.subr.bf16.mxu0 0
    %513 = vmatpush1.bf16.msra.mxu0 %v495
    %514 = vmatprep.subr.bf16.mxu0 0
    %515 = vmatpush1.bf16.msra.mxu0 %v496
    %516 = vmatprep.subr.bf16.mxu0 0
    %517 = vmatpush1.bf16.msra.mxu0 %v497
    %518 = vmatprep.subr.bf16.mxu0 0
    %519 = vmatpush1.bf16.msra.mxu0 %v498
    %520 = vmatprep.subr.bf16.mxu0 0
    %521 = vmatpush1.bf16.msra.mxu0 %v499
    %522 = vmatprep.subr.bf16.mxu0 0
    %523 = vmatpush1.bf16.msra.mxu0 %v500
    %524 = vmatprep.subr.bf16.mxu0 0
    %525 = vmatpush1.bf16.msra.mxu0 %v501
    %526 = vmatprep.subr.bf16.mxu0 0
    %527 = vmatpush1.bf16.msra.mxu0 0
    %528 = vmatprep.subr.bf16.mxu0 0
    %529 = vmatpush1.bf16.msra.mxu0 0
    %530 = vmatprep.subr.bf16.mxu0 0
    %531 = vmatpush1.bf16.msra.mxu0 0
    %532 = vmatprep.subr.bf16.mxu0 0
    %533 = vmatpush1.bf16.msra.mxu0 0
    %534 = vmatprep.subr.bf16.mxu0 0
    %535 = vmatpush1.bf16.msra.mxu0 0
    %536 = vmatprep.subr.bf16.mxu0 0
    %537 = vmatpush1.bf16.msra.mxu0 0
    %538 = vmatprep.subr.bf16.mxu0 0
    %539 = vmatpush1.bf16.msra.mxu0 0
    %540 = vmatprep.subr.bf16.mxu0 0
    %541 = vmatpush1.bf16.msra.mxu0 0
    %542 = vmatprep.mubr.bf16.mxu0 0
    %543 = vmatmul.mubr.bf16.gmra.mrb[0].mxu0 %v438
    %v544 = vpop.f32.mrb[0].mxu0
    %v545 = vadd.f32 %v460, %v544
    %v546 = vpop.f32.mrb[0].mxu0
    %v547 = vpop.f32.mrb[0].mxu0
    %v548 = vadd.f32 %v460, %v547
    %v549 = vpop.f32.mrb[0].mxu0
    %550 = vdwg.mxu0
    %v551 = vpack.c.bf16 %v548, %v545
    %v553 = vunpack.c.l.b16 %v551
    %v554 = vunpack.c.h.b16 %v551
    %v555 = vpack.c.b16 %v553, %v553
    %v556 = vpack.c.b16 %v554, %v554
    %559 = vst [vmem:[#allocation10] sm:$0xf] %v555
    %560 = vst [vmem:[#allocation10 + $0x4] sm:$0xf] %v556
    // Predicated region
    $region50: #{tpu_custom_call.1} parent=1 // pred_check
      _
    $region51: #{tpu_custom_call.1} parent=1 // pred_check_branch
      %562 = sbr.rel (0) target = $region53
    $region52: #{tpu_custom_call.1} parent=1 // pred_region
      %s564 = ssub.s32 128, 128
      %565 = vsyncadd [#allocation4], %s564
      %s566 = sshll.u32 [#allocation10], 4
      %s567 = int_to_ptr.vmem [resolvable:$true] %s566
      %572 = dma.vmem_to_hbm [thread:$0]  %s567, 128, %s8, [#allocation4], 64, 64, 4
    $region53: #{tpu_custom_call.1} parent=1 // pred_fallthru
      _
    // Predicated region
    $region54: #{tpu_custom_call.1} parent=1 // pred_check
      _
    $region55: #{tpu_custom_call.1} parent=1 // pred_check_branch
      %574 = sbr.rel (0) target = $region57
    $region56: #{tpu_custom_call.1} parent=1 // pred_region
      %575 = dma.done [#allocation4], 128
    $region57: #{tpu_custom_call.1} parent=1 // pred_fallthru
      _
    %576 = vsyncpa [#allocation3], 1
    %577 = vsyncpa [#allocation6], 1
    %578 = vsyncpa [#allocation9], 1
    %579 = vsyncpa [#allocation4], 1

</llo_original>
